<compile_context>
chip_gen: v7x
topology: tpu7x:2x2x1
jax: 0.10.0
libtpu: 0.0.40
codegen_flags: <defaults>
</compile_context>

<pallas_src>
import jax
import jax.numpy as jnp
from jax import lax
from jax.experimental import pallas as pl
from jax.experimental.pallas import tpu as pltpu

LANES = 128      # TPU lane width: context axis and output lane padding
SUBLANES = 8


def _build_forward(hidden, emb, batch, n_ctx, top_k):
    """Builds the fused Pallas forward for fixed static shapes."""
    H, E, B, N, K = hidden, emb, batch, n_ctx, top_k
    assert H == E, "block-diagonal packing assumes projector input dim == hidden"
    assert 2 * E <= LANES, "toy packing keeps adapter+projector outputs in one 128-lane tile"
    assert N <= LANES and 1 <= K <= N
    assert B + 1 <= SUBLANES

    B_PAD = SUBLANES          # adapted output rows padded to a full sublane group
    CTX0 = SUBLANES           # contexts start at an 8-aligned scratch row
    R_PAD = CTX0 + LANES      # stacked operand rows: [x | q | pad | contexts(128)]

    def kernel(x_ref, q_ref, ctx_ref, w_ref, ba_ref, bp_ref,
               adapted_ref, probs_ref, topk_ref, s_ref):
        # ---- assemble the block-structured stacked operand in VMEM scratch ----------
        #   rows 0..B-1 : x           in cols [0, H)   (adapter path)
        #   row  B      : query       in cols [H, 2H)  (projector path)
        #   rows 8..135 : padded ctx  in cols [H, 2H)  (projector path)
        s_ref[...] = jnp.zeros_like(s_ref)
        s_ref[0:B, 0:H] = x_ref[...]
        s_ref[B:B + 1, H:2 * H] = q_ref[...]
        s_ref[CTX0:CTX0 + LANES, H:2 * H] = ctx_ref[...]

        # ---- single MXU pass: adapter(x), projector(q), projector(ctx) --------------
        # bf16 operands, f32 accumulate.  Block-diag weight => output cols [0,E) hold
        # the adapter result, cols [E,2E) the projector result, cols [2E,128) are zero.
        p = jnp.dot(s_ref[...].astype(jnp.bfloat16), w_ref[...],
                    preferred_element_type=jnp.float32)                  # (R_PAD, 128)

        # ---- adapter epilogue: bias + ReLU, lane-dense (8,128) unmasked store -------
        # TODO(synk): training-mode Dropout(0.3) would need pltpu.prng_* Bernoulli masking.
        adapted_ref[...] = jnp.maximum(p[0:B_PAD, :] + ba_ref[...], 0.0)

        # ---- retrieval: cosine(proj(q), proj(ctx)) with contexts on the lane axis ---
        pq = p[B:B + 1, :] + bp_ref[...]                 # (1, 128), nonzero only in [E,2E)
        pc = p[CTX0:CTX0 + LANES, :] + bp_ref[...]       # (128, 128)

        dn = (((1,), (1,)), ((), ()))                    # contract the feature axis
        sim_raw = lax.dot_general(pq, pc, dn, preferred_element_type=jnp.float32)   # (1,128)
        cn_sq = lax.dot_general(jnp.ones((1, LANES), jnp.float32), pc * pc, dn,
                                preferred_element_type=jnp.float32)                 # (1,128)
        qn_sq = jnp.sum(pq * pq, axis=-1, keepdims=True)                            # (1,1)

        # F.cosine_similarity: x1/max(||x1||,eps) . x2/max(||x2||,eps), eps = 1e-8
        eps = jnp.float32(1e-8)
        inv_q = jnp.minimum(lax.rsqrt(qn_sq), 1.0 / eps)
        inv_c = jnp.minimum(lax.rsqrt(cn_sq), 1.0 / eps)
        sim = sim_raw * (inv_q * inv_c)                                              # (1,128)

        lane = lax.broadcasted_iota(jnp.int32, (1, LANES), 1)
        neg = jnp.float32(-1e30)
        sim = jnp.where(lane < N, sim, neg)              # mask padded context lanes

        # softmax over contexts (PyTorch dim=0 == lane axis here)
        mx = jnp.max(sim, axis=-1, keepdims=True)
        ex = jnp.exp(sim - mx)                           # padded lanes -> exp(-huge) = 0
        probs = ex * pl.reciprocal(jnp.sum(ex, axis=-1, keepdims=True), approx=True)
        probs_ref[...] = jnp.broadcast_to(probs, (B_PAD, LANES))

        # ---- in-kernel top-k: K iterations of masked argmax; indices -> SMEM --------
        work = sim
        for j in range(K):                               # K is small and static
            mj = jnp.max(work, axis=-1, keepdims=True)                   # (1,1)
            hit = jnp.where(work == mj, lane, jnp.int32(LANES))          # first max wins
            idx = jnp.min(hit, axis=-1, keepdims=True)                   # (1,1) int32
            topk_ref[0, j] = jnp.min(hit)                                # scalar -> SMEM
            work = jnp.where(lane == idx, neg, work)

    call = pl.pallas_call(
        kernel,
        out_shape=(
            jax.ShapeDtypeStruct((B_PAD, LANES), jnp.float32),   # adapted embeddings (padded slab)
            jax.ShapeDtypeStruct((B_PAD, LANES), jnp.float32),   # retrieval probs (padded slab)
            jax.ShapeDtypeStruct((1, K), jnp.int32),             # top-k context indices
        ),
        in_specs=[pl.BlockSpec(memory_space=pltpu.MemorySpace.VMEM)] * 6,
        out_specs=(
            pl.BlockSpec(memory_space=pltpu.MemorySpace.VMEM),
            pl.BlockSpec(memory_space=pltpu.MemorySpace.VMEM),
            pl.BlockSpec(memory_space=pltpu.MemorySpace.SMEM),
        ),
        scratch_shapes=[pltpu.VMEM((R_PAD, 2 * H), jnp.float32)],
        # TODO(synk): at production sizes (H=E=768, many rows) add a batch grid with
        # dimension_semantics=("parallel",) (v7x 2-TC sharding), keep weights block-0
        # resident across the grid, and size tiles against v7x's 64 MiB VMEM.
    )

    @jax.jit
    def fwd(x, q, ctx_pad, w_bd, ba_pad, bp_pad):
        a_pad, p_pad, idx = call(x, q, ctx_pad, w_bd, ba_pad, bp_pad)
        return a_pad[:B, :E], p_pad[0, :N], idx[0]

    return fwd


class HybridBERTGPT2ModelPallas:
    """Pallas port of HybridBERTGPT2Model's tensor forward path (inference)."""

    def __init__(self, key, hidden=32, embedding_dim=32, num_contexts=5, top_k=3):
        self.hidden = hidden
        self.embedding_dim = embedding_dim
        self.num_contexts = num_contexts
        self.top_k = min(top_k, num_contexts)

        k1, k2, k3, k4, k5 = jax.random.split(key, 5)
        # embedding_adapter Linear(hidden -> embedding_dim), stored pre-transposed (in, out)
        self.wa_t = (jax.random.normal(k1, (hidden, embedding_dim), jnp.float32)
                     * (1.0 / jnp.sqrt(hidden)))
        self.ba = jax.random.normal(k2, (embedding_dim,), jnp.float32) * 0.01
        # info_projector Linear(embedding_dim -> embedding_dim), stored pre-transposed
        self.wp_t = (jax.random.normal(k3, (embedding_dim, embedding_dim), jnp.float32)
                     * (1.0 / jnp.sqrt(embedding_dim)))
        self.bp = jax.random.normal(k4, (embedding_dim,), jnp.float32) * 0.01
        # synthetic context "[CLS]" embeddings (stands in for BertModel + tokenizer)
        self.context_embeddings = jax.random.normal(
            k5, (num_contexts, hidden), jnp.float32)

        # ---- one-time packing (done at init, never in the per-call wrapper) --------
        # block-diagonal [[Wa, 0], [0, Wp]] packed into a lane-dense (2H, 128) bf16 slab
        w_bd = jnp.zeros((2 * hidden, LANES), jnp.float32)
        w_bd = w_bd.at[0:hidden, 0:embedding_dim].set(self.wa_t)
        w_bd = w_bd.at[hidden:2 * hidden,
                       embedding_dim:2 * embedding_dim].set(self.wp_t)
        self.w_bd = w_bd.astype(jnp.bfloat16)
        # biases padded to their matching output columns
        self.ba_pad = jnp.zeros((1, LANES), jnp.float32).at[
            0, 0:embedding_dim].set(self.ba)
        self.bp_pad = jnp.zeros((1, LANES), jnp.float32).at[
            0, embedding_dim:2 * embedding_dim].set(self.bp)
        # contexts zero-padded to 128 rows (lane-dense context axis in the kernel)
        self.ctx_pad = jnp.zeros((LANES, hidden), jnp.float32).at[
            0:num_contexts].set(self.context_embeddings)
        self._fwd = None

    def forward(self, input_embedding, query_embedding, k=3):
        assert min(k, self.num_contexts) == self.top_k, "top-k is baked at build time"
        if self._fwd is None:
            self._fwd = _build_forward(self.hidden, self.embedding_dim,
                                       input_embedding.shape[0],
                                       self.num_contexts, self.top_k)
        adapted, probs, top_idx = self._fwd(
            input_embedding, query_embedding, self.ctx_pad,
            self.w_bd, self.ba_pad, self.bp_pad)
        # TODO(synk): GPT-2 autoregressive text generation and the string join of the
        # retrieved contexts have no clean Pallas equivalent.
        return {"embeddings": adapted,
                "retrieval_probs": probs,
                "retrieved_indices": top_idx}


if __name__ == "__main__":
    key = jax.random.PRNGKey(0)
    km, kx, kq = jax.random.split(key, 3)

    HIDDEN = 32    # stand-in for bert hidden_size (768 in the real model)
    EMB = 32       # stand-in for embedding_dim   (768 in the real model)
    BATCH = 2      # two input "sentences"
    N_CTX = 5      # matches InformationContexts default (5 texts)
    TOP_K = 3

    model = HybridBERTGPT2ModelPallas(km, hidden=HIDDEN, embedding_dim=EMB,
                                      num_contexts=N_CTX, top_k=TOP_K)

    # synthetic BERT [CLS] embeddings for the input text and the query text
    input_embedding = jax.random.normal(kx, (BATCH, HIDDEN), jnp.float32)
    query_embedding = jax.random.normal(kq, (1, HIDDEN), jnp.float32)

    out = model.forward(input_embedding, query_embedding, k=TOP_K)
    jax.block_until_ready(out["embeddings"])
    jax.block_until_ready(out["retrieval_probs"])
    jax.block_until_ready(out["retrieved_indices"])

    # ---- shape checks ----
    assert out["embeddings"].shape == (BATCH, EMB)
    assert out["retrieval_probs"].shape == (N_CTX,)
    assert out["retrieved_indices"].shape == (TOP_K,)

    # ---- pure-JAX reference on the same bf16-rounded operands ----
    def r32(a):
        return a.astype(jnp.bfloat16).astype(jnp.float32)

    ref_adapted = jnp.maximum(r32(input_embedding) @ r32(model.wa_t) + model.ba, 0.0)
    pq_ref = r32(query_embedding) @ r32(model.wp_t) + model.bp
    pc_ref = r32(model.context_embeddings) @ r32(model.wp_t) + model.bp
    eps = 1e-8
    nq = jnp.maximum(jnp.linalg.norm(pq_ref, axis=-1, keepdims=True), eps)
    nc = jnp.maximum(jnp.linalg.norm(pc_ref, axis=-1, keepdims=True), eps)
    sims_ref = (pq_ref / nq) @ (pc_ref / nc).T            # (1, N)
    ref_probs = jax.nn.softmax(sims_ref[0], axis=0)

    assert jnp.allclose(out["embeddings"], ref_adapted, rtol=5e-3, atol=5e-3)
    assert jnp.allclose(out["retrieval_probs"], ref_probs, rtol=5e-3, atol=5e-3)
    # softmax probabilities sum to ~1 (approx reciprocal in the kernel)
    assert abs(float(jnp.sum(out["retrieval_probs"])) - 1.0) < 5e-3
    # in-kernel top-k agrees with lax.top_k on the kernel's own probabilities
    chk_idx = jax.lax.top_k(out["retrieval_probs"], TOP_K)[1]
    assert [int(i) for i in out["retrieved_indices"]] == [int(i) for i in chk_idx]

    print("KERNEL_OK")
</pallas_src>

<mosaic_0001>
module attributes {stable_mosaic.version = 11 : i64} {
  func.func @kernel(%arg0: memref<2x32xf32, #tpu.memory_space<vmem>>, %arg1: memref<1x32xf32, #tpu.memory_space<vmem>>, %arg2: memref<128x32xf32, #tpu.memory_space<vmem>>, %arg3: memref<64x128xbf16, #tpu.memory_space<vmem>>, %arg4: memref<1x128xf32, #tpu.memory_space<vmem>>, %arg5: memref<1x128xf32, #tpu.memory_space<vmem>>, %arg6: memref<8x128xf32, #tpu.memory_space<vmem>>, %arg7: memref<8x128xf32, #tpu.memory_space<vmem>>, %arg8: memref<1x3xi32, #tpu.memory_space<smem>>, %arg9: memref<136x64xf32, #tpu.memory_space<vmem>>) attributes {dimension_semantics = [], scalar_prefetch = 0 : i64, scratch_operands = 1 : i64, tpu.core_type = #tpu.core_type<tc>} {
    %cst = arith.constant 0.000000e+00 : f32
    %0 = vector.broadcast %cst : f32 to vector<136x64xf32>
    %c0 = arith.constant 0 : index
    %c0_0 = arith.constant 0 : index
    %1 = vector.load %arg9[%c0, %c0_0] : memref<136x64xf32, #tpu.memory_space<vmem>>, vector<136x64xf32>
    tpu.vector_store %arg9[%c0, %c0_0], %0 {strides = array<i32>} : memref<136x64xf32, #tpu.memory_space<vmem>>, vector<136x64xf32>,
    %c0_1 = arith.constant 0 : index
    %c0_2 = arith.constant 0 : index
    %2 = vector.load %arg0[%c0_1, %c0_2] : memref<2x32xf32, #tpu.memory_space<vmem>>, vector<2x32xf32>
    %c0_3 = arith.constant 0 : index
    %c0_4 = arith.constant 0 : index
    %3 = vector.load %arg9[%c0_3, %c0_4] : memref<136x64xf32, #tpu.memory_space<vmem>>, vector<2x32xf32>
    tpu.vector_store %arg9[%c0_3, %c0_4], %2 {strides = array<i32>} : memref<136x64xf32, #tpu.memory_space<vmem>>, vector<2x32xf32>,
    %c0_5 = arith.constant 0 : index
    %c0_6 = arith.constant 0 : index
    %4 = vector.load %arg1[%c0_5, %c0_6] : memref<1x32xf32, #tpu.memory_space<vmem>>, vector<1x32xf32>
    %c2 = arith.constant 2 : index
    %c32 = arith.constant 32 : index
    %5 = vector.load %arg9[%c2, %c32] : memref<136x64xf32, #tpu.memory_space<vmem>>, vector<1x32xf32>
    tpu.vector_store %arg9[%c2, %c32], %4 {strides = array<i32>} : memref<136x64xf32, #tpu.memory_space<vmem>>, vector<1x32xf32>,
    %c0_7 = arith.constant 0 : index
    %c0_8 = arith.constant 0 : index
    %6 = vector.load %arg2[%c0_7, %c0_8] : memref<128x32xf32, #tpu.memory_space<vmem>>, vector<128x32xf32>
    %c8 = arith.constant 8 : index
    %c32_9 = arith.constant 32 : index
    %7 = vector.load %arg9[%c8, %c32_9] : memref<136x64xf32, #tpu.memory_space<vmem>>, vector<128x32xf32>
    tpu.vector_store %arg9[%c8, %c32_9], %6 {strides = array<i32>} : memref<136x64xf32, #tpu.memory_space<vmem>>, vector<128x32xf32>,
    %c0_10 = arith.constant 0 : index
    %c0_11 = arith.constant 0 : index
    %8 = vector.load %arg9[%c0_10, %c0_11] : memref<136x64xf32, #tpu.memory_space<vmem>>, vector<136x64xf32>
    %9 = arith.truncf %8 : vector<136x64xf32> to vector<136x64xbf16>
    %c0_12 = arith.constant 0 : index
    %c0_13 = arith.constant 0 : index
    %10 = vector.load %arg3[%c0_12, %c0_13] : memref<64x128xbf16, #tpu.memory_space<vmem>>, vector<64x128xbf16>
    %cst_14 = arith.constant dense<0.000000e+00> : vector<136x128xf32>
    %11 = tpu.matmul %9, %10, %cst_14 {dimension_numbers = #tpu.dot_dimension_numbers<[1], [0], [0], [1], [0, 0, 1, 1], [], []>} : vector<136x64xbf16>, vector<64x128xbf16>, vector<136x128xf32> -> vector<136x128xf32>
    %12 = vector.extract_strided_slice %11 {offsets = [0, 0], sizes = [8, 128], strides = [1, 1]} : vector<136x128xf32> to vector<8x128xf32>
    %c0_15 = arith.constant 0 : index
    %c0_16 = arith.constant 0 : index
    %13 = vector.load %arg4[%c0_15, %c0_16] : memref<1x128xf32, #tpu.memory_space<vmem>>, vector<1x128xf32>
    %14 = vector.broadcast %13 : vector<1x128xf32> to vector<8x128xf32>
    %15 = arith.addf %12, %14 : vector<8x128xf32>
    %cst_17 = arith.constant 0.000000e+00 : f32
    %16 = vector.broadcast %cst_17 : f32 to vector<8x128xf32>
    %17 = arith.maximumf %15, %16 : vector<8x128xf32>
    %c0_18 = arith.constant 0 : index
    %c0_19 = arith.constant 0 : index
    %18 = vector.load %arg6[%c0_18, %c0_19] : memref<8x128xf32, #tpu.memory_space<vmem>>, vector<8x128xf32>
    tpu.vector_store %arg6[%c0_18, %c0_19], %17 {strides = array<i32>} : memref<8x128xf32, #tpu.memory_space<vmem>>, vector<8x128xf32>,
    %19 = vector.extract_strided_slice %11 {offsets = [2, 0], sizes = [1, 128], strides = [1, 1]} : vector<136x128xf32> to vector<1x128xf32>
    %c0_20 = arith.constant 0 : index
    %c0_21 = arith.constant 0 : index
    %20 = vector.load %arg5[%c0_20, %c0_21] : memref<1x128xf32, #tpu.memory_space<vmem>>, vector<1x128xf32>
    %21 = arith.addf %19, %20 : vector<1x128xf32>
    %22 = vector.extract_strided_slice %11 {offsets = [8, 0], sizes = [128, 128], strides = [1, 1]} : vector<136x128xf32> to vector<128x128xf32>
    %c0_22 = arith.constant 0 : index
    %c0_23 = arith.constant 0 : index
    %23 = vector.load %arg5[%c0_22, %c0_23] : memref<1x128xf32, #tpu.memory_space<vmem>>, vector<1x128xf32>
    %24 = vector.broadcast %23 : vector<1x128xf32> to vector<128x128xf32>
    %25 = arith.addf %22, %24 : vector<128x128xf32>
    %cst_24 = arith.constant dense<0.000000e+00> : vector<1x128xf32>
    %26 = tpu.matmul %21, %25, %cst_24 {dimension_numbers = #tpu.dot_dimension_numbers<[1], [1], [0], [0], [0, 0, 1, 0], [], []>} : vector<1x128xf32>, vector<128x128xf32>, vector<1x128xf32> -> vector<1x128xf32>
    %cst_25 = arith.constant 1.000000e+00 : f32
    %27 = vector.broadcast %cst_25 : f32 to vector<1x128xf32>
    %28 = arith.mulf %25, %25 : vector<128x128xf32>
    %cst_26 = arith.constant dense<0.000000e+00> : vector<1x128xf32>
    %29 = tpu.matmul %27, %28, %cst_26 {dimension_numbers = #tpu.dot_dimension_numbers<[1], [1], [0], [0], [0, 0, 1, 0], [], []>} : vector<1x128xf32>, vector<128x128xf32>, vector<1x128xf32> -> vector<1x128xf32>
    %30 = arith.mulf %21, %21 : vector<1x128xf32>
    %cst_27 = arith.constant dense<0.000000e+00> : vector<1xf32>
    %31 = vector.multi_reduction <add>, %30, %cst_27 [1] : vector<1x128xf32> to vector<1xf32>
    %32 = vector.shape_cast %31 : vector<1xf32> to vector<1x1xf32>
    %33 = math.rsqrt %32 : vector<1x1xf32>
    %cst_28 = arith.constant 1.000000e+00 : f32
    %cst_29 = arith.constant 9.99999993E-9 : f32
    %34 = arith.divf %cst_28, %cst_29 : f32
    %35 = vector.broadcast %34 : f32 to vector<1x1xf32>
    %36 = arith.minimumf %33, %35 : vector<1x1xf32>
    %37 = math.rsqrt %29 : vector<1x128xf32>
    %cst_30 = arith.constant 1.000000e+00 : f32
    %cst_31 = arith.constant 9.99999993E-9 : f32
    %38 = arith.divf %cst_30, %cst_31 : f32
    %39 = vector.broadcast %38 : f32 to vector<1x128xf32>
    %40 = arith.minimumf %37, %39 : vector<1x128xf32>
    %41 = vector.broadcast %36 : vector<1x1xf32> to vector<1x128xf32>
    %42 = arith.mulf %41, %40 : vector<1x128xf32>
    %43 = arith.mulf %26, %42 : vector<1x128xf32>
    %44 = tpu.iota {dimensions = array<i32: 1>} : vector<1x128xi32>
    %c5_i32 = arith.constant 5 : i32
    %45 = vector.broadcast %c5_i32 : i32 to vector<1x128xi32>
    %46 = arith.cmpi slt, %44, %45 : vector<1x128xi32>
    %cst_32 = arith.constant -1.000000e+30 : f32
    %47 = vector.broadcast %cst_32 : f32 to vector<1x128xf32>
    %48 = arith.select %46, %43, %47 : vector<1x128xi1>, vector<1x128xf32>
    %cst_33 = arith.constant dense<0xFF800000> : vector<1xf32>
    %49 = vector.multi_reduction <maximumf>, %48, %cst_33 [1] : vector<1x128xf32> to vector<1xf32>
    %50 = vector.shape_cast %49 : vector<1xf32> to vector<1x1xf32>
    %51 = vector.broadcast %50 : vector<1x1xf32> to vector<1x128xf32>
    %52 = arith.subf %48, %51 : vector<1x128xf32>
    %53 = math.exp %52 : vector<1x128xf32>
    %cst_34 = arith.constant dense<0.000000e+00> : vector<1xf32>
    %54 = vector.multi_reduction <add>, %53, %cst_34 [1] : vector<1x128xf32> to vector<1xf32>
    %55 = vector.shape_cast %54 : vector<1xf32> to vector<1x1xf32>
    %56 = tpu.reciprocal %55 {approx = true} : vector<1x1xf32> -> vector<1x1xf32>
    %57 = vector.broadcast %56 : vector<1x1xf32> to vector<1x128xf32>
    %58 = arith.mulf %53, %57 : vector<1x128xf32>
    %59 = vector.shape_cast %58 : vector<1x128xf32> to vector<1x128xf32>
    %60 = vector.broadcast %59 : vector<1x128xf32> to vector<8x128xf32>
    %c0_35 = arith.constant 0 : index
    %c0_36 = arith.constant 0 : index
    %61 = vector.load %arg7[%c0_35, %c0_36] : memref<8x128xf32, #tpu.memory_space<vmem>>, vector<8x128xf32>
    tpu.vector_store %arg7[%c0_35, %c0_36], %60 {strides = array<i32>} : memref<8x128xf32, #tpu.memory_space<vmem>>, vector<8x128xf32>,
    %cst_37 = arith.constant dense<0xFF800000> : vector<1xf32>
    %62 = vector.multi_reduction <maximumf>, %48, %cst_37 [1] : vector<1x128xf32> to vector<1xf32>
    %63 = vector.shape_cast %62 : vector<1xf32> to vector<1x1xf32>
    %64 = vector.broadcast %63 : vector<1x1xf32> to vector<1x128xf32>
    %65 = arith.cmpf oeq, %48, %64 : vector<1x128xf32>
    %c128_i32 = arith.constant 128 : i32
    %66 = vector.broadcast %c128_i32 : i32 to vector<1x128xi32>
    %67 = arith.select %65, %44, %66 : vector<1x128xi1>, vector<1x128xi32>
    %cst_38 = arith.constant dense<2147483647> : vector<1xi32>
    %68 = vector.multi_reduction <minsi>, %67, %cst_38 [1] : vector<1x128xi32> to vector<1xi32>
    %69 = vector.shape_cast %68 : vector<1xi32> to vector<1x1xi32>
    %70 = vector.shape_cast %67 : vector<1x128xi32> to vector<1x1x128xi32>
    %cst_39 = arith.constant dense<2147483647> : vector<1xi32>
    %71 = vector.multi_reduction <minsi>, %70, %cst_39 [1, 2] : vector<1x1x128xi32> to vector<1xi32>
    %72 = vector.shape_cast %71 : vector<1xi32> to vector<1x1x1xi32>
    %73 = vector.extract %72[0, 0, 0] : i32 from vector<1x1x1xi32>
    %c0_40 = arith.constant 0 : index
    %c0_41 = arith.constant 0 : index
    %74 = memref.load %arg8[%c0_40, %c0_41] : memref<1x3xi32, #tpu.memory_space<smem>>
    memref.store %73, %arg8[%c0_40, %c0_41] : memref<1x3xi32, #tpu.memory_space<smem>>
    %75 = vector.broadcast %69 : vector<1x1xi32> to vector<1x128xi32>
    %76 = arith.cmpi eq, %44, %75 : vector<1x128xi32>
    %cst_42 = arith.constant -1.000000e+30 : f32
    %77 = vector.broadcast %cst_42 : f32 to vector<1x128xf32>
    %78 = arith.select %76, %77, %48 : vector<1x128xi1>, vector<1x128xf32>
    %cst_43 = arith.constant dense<0xFF800000> : vector<1xf32>
    %79 = vector.multi_reduction <maximumf>, %78, %cst_43 [1] : vector<1x128xf32> to vector<1xf32>
    %80 = vector.shape_cast %79 : vector<1xf32> to vector<1x1xf32>
    %81 = vector.broadcast %80 : vector<1x1xf32> to vector<1x128xf32>
    %82 = arith.cmpf oeq, %78, %81 : vector<1x128xf32>
    %c128_i32_44 = arith.constant 128 : i32
    %83 = vector.broadcast %c128_i32_44 : i32 to vector<1x128xi32>
    %84 = arith.select %82, %44, %83 : vector<1x128xi1>, vector<1x128xi32>
    %cst_45 = arith.constant dense<2147483647> : vector<1xi32>
    %85 = vector.multi_reduction <minsi>, %84, %cst_45 [1] : vector<1x128xi32> to vector<1xi32>
    %86 = vector.shape_cast %85 : vector<1xi32> to vector<1x1xi32>
    %87 = vector.shape_cast %84 : vector<1x128xi32> to vector<1x1x128xi32>
    %cst_46 = arith.constant dense<2147483647> : vector<1xi32>
    %88 = vector.multi_reduction <minsi>, %87, %cst_46 [1, 2] : vector<1x1x128xi32> to vector<1xi32>
    %89 = vector.shape_cast %88 : vector<1xi32> to vector<1x1x1xi32>
    %90 = vector.extract %89[0, 0, 0] : i32 from vector<1x1x1xi32>
    %c0_47 = arith.constant 0 : index
    %c1 = arith.constant 1 : index
    %91 = memref.load %arg8[%c0_47, %c1] : memref<1x3xi32, #tpu.memory_space<smem>>
    memref.store %90, %arg8[%c0_47, %c1] : memref<1x3xi32, #tpu.memory_space<smem>>
    %92 = vector.broadcast %86 : vector<1x1xi32> to vector<1x128xi32>
    %93 = arith.cmpi eq, %44, %92 : vector<1x128xi32>
    %cst_48 = arith.constant -1.000000e+30 : f32
    %94 = vector.broadcast %cst_48 : f32 to vector<1x128xf32>
    %95 = arith.select %93, %94, %78 : vector<1x128xi1>, vector<1x128xf32>
    %cst_49 = arith.constant dense<0xFF800000> : vector<1xf32>
    %96 = vector.multi_reduction <maximumf>, %95, %cst_49 [1] : vector<1x128xf32> to vector<1xf32>
    %97 = vector.shape_cast %96 : vector<1xf32> to vector<1x1xf32>
    %98 = vector.broadcast %97 : vector<1x1xf32> to vector<1x128xf32>
    %99 = arith.cmpf oeq, %95, %98 : vector<1x128xf32>
    %c128_i32_50 = arith.constant 128 : i32
    %100 = vector.broadcast %c128_i32_50 : i32 to vector<1x128xi32>
    %101 = arith.select %99, %44, %100 : vector<1x128xi1>, vector<1x128xi32>
    %102 = vector.shape_cast %101 : vector<1x128xi32> to vector<1x1x128xi32>
    %cst_51 = arith.constant dense<2147483647> : vector<1xi32>
    %103 = vector.multi_reduction <minsi>, %102, %cst_51 [1, 2] : vector<1x1x128xi32> to vector<1xi32>
    %104 = vector.shape_cast %103 : vector<1xi32> to vector<1x1x1xi32>
    %105 = vector.extract %104[0, 0, 0] : i32 from vector<1x1x1xi32>
    %c0_52 = arith.constant 0 : index
    %c2_53 = arith.constant 2 : index
    %106 = memref.load %arg8[%c0_52, %c2_53] : memref<1x3xi32, #tpu.memory_space<smem>>
    memref.store %105, %arg8[%c0_52, %c2_53] : memref<1x3xi32, #tpu.memory_space<smem>>
    return
  }
}

</mosaic_0001>

<llo_original>
// kernel: fwd.1
$region0: #{fwd.1}
  #allocation0 [shape = 'u32[]', space=smem, size = 0x4, offset = 0x4, fixed_abs, tag = 'smem constant byte address 0x4 - core index']
  #allocation1 [shape = 'u32[144,128]{1,0:T(1,128)}', space=vmem, size = 0x12000, scoped, tag = 'internal scratch']
  #allocation2 [shape = 'f32[136,64]{1,0:T(8,128)}', space=vmem, size = 0x11000, scoped, tag = 'scratch operand']
  %s0 = inlined_call_operand.vmem [shape: f32[2,32], index: 0, kind: input, shape index: {}]
  %s1 = inlined_call_operand.vmem [shape: f32[1,32], index: 1, kind: input, shape index: {}]
  %s2 = inlined_call_operand.vmem [shape: f32[128,32], index: 2, kind: input, shape index: {}]
  %s3 = inlined_call_operand.vmem [shape: bf16[64,128], index: 3, kind: input, shape index: {}]
  %s4 = inlined_call_operand.vmem [shape: f32[1,128], index: 4, kind: input, shape index: {}]
  %s5 = inlined_call_operand.vmem [shape: f32[1,128], index: 5, kind: input, shape index: {}]
  %s6 = inlined_call_operand.vmem [shape: f32[8,128], index: 6, kind: output, shape index: {0}]
  %s7 = inlined_call_operand.vmem [shape: f32[8,128], index: 7, kind: output, shape index: {1}]
  %s8 = inlined_call_operand.hbm [shape: s32[1,3], index: 8, kind: output, shape index: {2}]
  %9 = xla_tuple %s6, %s7, %s8
  %s10 = sld [smem:[#allocation0]]
  $region50: #{fwd.1} parent=0
    _
  %s12 = ssub.s32 1, %s10
  %s13 = scalar_select 0, %s12, %s10
  $region1: #{fwd.1} parent=0
    #allocation3 [shape = 'u8[512]{0}', space=smem, size = 0x200, scoped, tag = 'output window, operand 2, single buffered']
    #allocation4 [shape = 's32[1]{0}', space=sflag, size = 0x4, scoped, tag = 'scoped memory for fwd.1']
    %14 = vsyncpa [#allocation4], 0
    // Predicated region
    $region2: #{fwd.1} parent=1 // pred_check
      _
    $region3: #{fwd.1} parent=1 // pred_check_branch
      %16 = sbr.rel (0) target = $region5
    $region4: #{fwd.1} parent=1 // pred_region
      _
    $region5: #{fwd.1} parent=1 // pred_fallthru
      _
    // Predicated region
    $region6: #{fwd.1} parent=1 // pred_check
      _
    $region7: #{fwd.1} parent=1 // pred_check_branch
      %18 = sbr.rel (0) target = $region9
    $region8: #{fwd.1} parent=1 // pred_region
      _
    $region9: #{fwd.1} parent=1 // pred_fallthru
      _
    // Predicated region
    $region10: #{fwd.1} parent=1 // pred_check
      _
    $region11: #{fwd.1} parent=1 // pred_check_branch
      %20 = sbr.rel (0) target = $region13
    $region12: #{fwd.1} parent=1 // pred_region
      _
    $region13: #{fwd.1} parent=1 // pred_fallthru
      _
    // Predicated region
    $region14: #{fwd.1} parent=1 // pred_check
      _
    $region15: #{fwd.1} parent=1 // pred_check_branch
      %22 = sbr.rel (0) target = $region17
    $region16: #{fwd.1} parent=1 // pred_region
      _
    $region17: #{fwd.1} parent=1 // pred_fallthru
      _
    // Predicated region
    $region18: #{fwd.1} parent=1 // pred_check
      _
    $region19: #{fwd.1} parent=1 // pred_check_branch
      %24 = sbr.rel (0) target = $region21
    $region20: #{fwd.1} parent=1 // pred_region
      _
    $region21: #{fwd.1} parent=1 // pred_fallthru
      _
    // Predicated region
    $region22: #{fwd.1} parent=1 // pred_check
      _
    $region23: #{fwd.1} parent=1 // pred_check_branch
      %26 = sbr.rel (0) target = $region25
    $region24: #{fwd.1} parent=1 // pred_region
      _
    $region25: #{fwd.1} parent=1 // pred_fallthru
      _
    %vm28 = vcmask 523264
    %29 = vst.msk [vmem:[#allocation2] sm:$0xff] %vm28, 0.0
    %30 = vst.msk [vmem:[#allocation2 + $0x8] sm:$0xff] %vm28, 0.0
    %31 = vst.msk [vmem:[#allocation2 + $0x10] sm:$0xff] %vm28, 0.0
    %32 = vst.msk [vmem:[#allocation2 + $0x18] sm:$0xff] %vm28, 0.0
    %33 = vst.msk [vmem:[#allocation2 + $0x20] sm:$0xff] %vm28, 0.0
    %34 = vst.msk [vmem:[#allocation2 + $0x28] sm:$0xff] %vm28, 0.0
    %35 = vst.msk [vmem:[#allocation2 + $0x30] sm:$0xff] %vm28, 0.0
    %36 = vst.msk [vmem:[#allocation2 + $0x38] sm:$0xff] %vm28, 0.0
    %37 = vst.msk [vmem:[#allocation2 + $0x40] sm:$0xff] %vm28, 0.0
    %38 = vst.msk [vmem:[#allocation2 + $0x48] sm:$0xff] %vm28, 0.0
    %39 = vst.msk [vmem:[#allocation2 + $0x50] sm:$0xff] %vm28, 0.0
    %40 = vst.msk [vmem:[#allocation2 + $0x58] sm:$0xff] %vm28, 0.0
    %41 = vst.msk [vmem:[#allocation2 + $0x60] sm:$0xff] %vm28, 0.0
    %42 = vst.msk [vmem:[#allocation2 + $0x68] sm:$0xff] %vm28, 0.0
    %43 = vst.msk [vmem:[#allocation2 + $0x70] sm:$0xff] %vm28, 0.0
    %44 = vst.msk [vmem:[#allocation2 + $0x78] sm:$0xff] %vm28, 0.0
    %45 = vst.msk [vmem:[#allocation2 + $0x80] sm:$0xff] %vm28, 0.0
    %v46 = vld [vmem:[%s0] sm:$0x3]
    %vm47 = vcmask 254976
    %48 = vst.msk [vmem:[#allocation2] sm:$0x3] %vm47, %v46
    %v49 = vld [vmem:[%s1] sm:$0x1]
    %v51 = vlaneseq
    %v52 = vshrl.u32 %v51, 7
    %v53 = vsub.s32 0, %v52
    %v54 = vrot.slane %v49, %v53
    %55 = vrot.lane.b32.xlu0 %v54, 32
    %v56 = vpop.permute.xlu0 %55
    %vm58 = vcmask 516352
    %59 = vst.msk [vmem:[#allocation2 + $0x2] sm:$0x1] %vm58, %v56
    %v60 = vld [vmem:[%s2] sm:$0xff]
    %v61 = vld [vmem:[%s2 + $0x8] sm:$0xff]
    %v62 = vld [vmem:[%s2 + $0x10] sm:$0xff]
    %v63 = vld [vmem:[%s2 + $0x18] sm:$0xff]
    %v64 = vld [vmem:[%s2 + $0x20] sm:$0xff]
    %v65 = vld [vmem:[%s2 + $0x28] sm:$0xff]
    %v66 = vld [vmem:[%s2 + $0x30] sm:$0xff]
    %v67 = vld [vmem:[%s2 + $0x38] sm:$0xff]
    %v68 = vld [vmem:[%s2 + $0x40] sm:$0xff]
    %v69 = vld [vmem:[%s2 + $0x48] sm:$0xff]
    %v70 = vld [vmem:[%s2 + $0x50] sm:$0xff]
    %v71 = vld [vmem:[%s2 + $0x58] sm:$0xff]
    %v72 = vld [vmem:[%s2 + $0x60] sm:$0xff]
    %v73 = vld [vmem:[%s2 + $0x68] sm:$0xff]
    %v74 = vld [vmem:[%s2 + $0x70] sm:$0xff]
    %v75 = vld [vmem:[%s2 + $0x78] sm:$0xff]
    %92 = vrot.lane.b32.xlu0 %v60, 32
    %v93 = vpop.permute.xlu0 %92
    %94 = vrot.lane.b32.xlu0 %v61, 32
    %v95 = vpop.permute.xlu0 %94
    %96 = vrot.lane.b32.xlu0 %v62, 32
    %v97 = vpop.permute.xlu0 %96
    %98 = vrot.lane.b32.xlu0 %v63, 32
    %v99 = vpop.permute.xlu0 %98
    %100 = vrot.lane.b32.xlu0 %v64, 32
    %v101 = vpop.permute.xlu0 %100
    %102 = vrot.lane.b32.xlu0 %v65, 32
    %v103 = vpop.permute.xlu0 %102
    %104 = vrot.lane.b32.xlu0 %v66, 32
    %v105 = vpop.permute.xlu0 %104
    %106 = vrot.lane.b32.xlu0 %v67, 32
    %v107 = vpop.permute.xlu0 %106
    %108 = vrot.lane.b32.xlu0 %v68, 32
    %v109 = vpop.permute.xlu0 %108
    %110 = vrot.lane.b32.xlu0 %v69, 32
    %v111 = vpop.permute.xlu0 %110
    %112 = vrot.lane.b32.xlu0 %v70, 32
    %v113 = vpop.permute.xlu0 %112
    %114 = vrot.lane.b32.xlu0 %v71, 32
    %v115 = vpop.permute.xlu0 %114
    %116 = vrot.lane.b32.xlu0 %v72, 32
    %v117 = vpop.permute.xlu0 %116
    %118 = vrot.lane.b32.xlu0 %v73, 32
    %v119 = vpop.permute.xlu0 %118
    %120 = vrot.lane.b32.xlu0 %v74, 32
    %v121 = vpop.permute.xlu0 %120
    %122 = vrot.lane.b32.xlu0 %v75, 32
    %v123 = vpop.permute.xlu0 %122
    %vm140 = vcmask 523520
    %141 = vst.msk [vmem:[#allocation2 + $0x8] sm:$0xff] %vm140, %v93
    %142 = vst.msk [vmem:[#allocation2 + $0x10] sm:$0xff] %vm140, %v95
    %143 = vst.msk [vmem:[#allocation2 + $0x18] sm:$0xff] %vm140, %v97
    %144 = vst.msk [vmem:[#allocation2 + $0x20] sm:$0xff] %vm140, %v99
    %145 = vst.msk [vmem:[#allocation2 + $0x28] sm:$0xff] %vm140, %v101
    %146 = vst.msk [vmem:[#allocation2 + $0x30] sm:$0xff] %vm140, %v103
    %147 = vst.msk [vmem:[#allocation2 + $0x38] sm:$0xff] %vm140, %v105
    %148 = vst.msk [vmem:[#allocation2 + $0x40] sm:$0xff] %vm140, %v107
    %149 = vst.msk [vmem:[#allocation2 + $0x48] sm:$0xff] %vm140, %v109
    %150 = vst.msk [vmem:[#allocation2 + $0x50] sm:$0xff] %vm140, %v111
    %151 = vst.msk [vmem:[#allocation2 + $0x58] sm:$0xff] %vm140, %v113
    %152 = vst.msk [vmem:[#allocation2 + $0x60] sm:$0xff] %vm140, %v115
    %153 = vst.msk [vmem:[#allocation2 + $0x68] sm:$0xff] %vm140, %v117
    %154 = vst.msk [vmem:[#allocation2 + $0x70] sm:$0xff] %vm140, %v119
    %155 = vst.msk [vmem:[#allocation2 + $0x78] sm:$0xff] %vm140, %v121
    %156 = vst.msk [vmem:[#allocation2 + $0x80] sm:$0xff] %vm140, %v123
    %v157 = vld [vmem:[#allocation2] sm:$0xff]
    %v158 = vld [vmem:[#allocation2 + $0x8] sm:$0xff]
    %v159 = vld [vmem:[#allocation2 + $0x10] sm:$0xff]
    %v160 = vld [vmem:[#allocation2 + $0x18] sm:$0xff]
    %v161 = vld [vmem:[#allocation2 + $0x20] sm:$0xff]
    %v162 = vld [vmem:[#allocation2 + $0x28] sm:$0xff]
    %v163 = vld [vmem:[#allocation2 + $0x30] sm:$0xff]
    %v164 = vld [vmem:[#allocation2 + $0x38] sm:$0xff]
    %v165 = vld [vmem:[#allocation2 + $0x40] sm:$0xff]
    %v166 = vld [vmem:[#allocation2 + $0x48] sm:$0xff]
    %v167 = vld [vmem:[#allocation2 + $0x50] sm:$0xff]
    %v168 = vld [vmem:[#allocation2 + $0x58] sm:$0xff]
    %v169 = vld [vmem:[#allocation2 + $0x60] sm:$0xff]
    %v170 = vld [vmem:[#allocation2 + $0x68] sm:$0xff]
    %v171 = vld [vmem:[#allocation2 + $0x70] sm:$0xff]
    %v172 = vld [vmem:[#allocation2 + $0x78] sm:$0xff]
    %v173 = vld [vmem:[#allocation2 + $0x80] sm:$0xff]
    %v174 = vpack.c.bf16 %v158, %v157
    %v175 = vpack.c.bf16 %v160, %v159
    %v176 = vpack.c.bf16 %v162, %v161
    %v177 = vpack.c.bf16 %v164, %v163
    %v178 = vpack.c.bf16 %v166, %v165
    %v179 = vpack.c.bf16 %v168, %v167
    %v180 = vpack.c.bf16 %v170, %v169
    %v181 = vpack.c.bf16 %v172, %v171
    %v182 = vpack.c.bf16 %v173, %v173
    %v183 = vld [vmem:[%s3] sm:$0xf]
    %v184 = vld [vmem:[%s3 + $0x4] sm:$0xf]
    %v185 = vld [vmem:[%s3 + $0x8] sm:$0xf]
    %v186 = vld [vmem:[%s3 + $0xc] sm:$0xf]
    %v187 = vld [vmem:[%s3 + $0x10] sm:$0xf]
    %v188 = vld [vmem:[%s3 + $0x14] sm:$0xf]
    %v189 = vld [vmem:[%s3 + $0x18] sm:$0xf]
    %v190 = vld [vmem:[%s3 + $0x1c] sm:$0xf]
    %v199 = vunpack.c.l.b16 %v183
    %v200 = vunpack.c.l.b16 %v184
    %v201 = vunpack.c.l.b16 %v185
    %v202 = vunpack.c.l.b16 %v186
    %v203 = vunpack.c.l.b16 %v187
    %v204 = vunpack.c.l.b16 %v188
    %v205 = vunpack.c.l.b16 %v189
    %v206 = vunpack.c.l.b16 %v190
    %v207 = vpack.c.b16 %v200, %v199
    %v208 = vpack.c.b16 %v202, %v201
    %v209 = vpack.c.b16 %v204, %v203
    %v210 = vpack.c.b16 %v206, %v205
    %v216 = vsel %vm28, %v174, 0
    %v219 = vsel %vm28, %v175, 0
    %v222 = vsel %vm28, %v176, 0
    %v225 = vsel %vm28, %v177, 0
    %v228 = vsel %vm28, %v178, 0
    %v231 = vsel %vm28, %v179, 0
    %v234 = vsel %vm28, %v180, 0
    %v237 = vsel %vm28, %v181, 0
    %v240 = vsel %vm28, %v182, 0
    %242 = vmatprep.subr.bf16.mxu0 0
    %243 = vmatpush1.bf16.msra.mxu0 %v207
    %244 = vmatprep.subr.bf16.mxu0 0
    %245 = vmatpush1.bf16.msra.mxu0 %v208
    %246 = vmatprep.subr.bf16.mxu0 0
    %247 = vmatpush1.bf16.msra.mxu0 %v209
    %248 = vmatprep.subr.bf16.mxu0 0
    %249 = vmatpush1.bf16.msra.mxu0 %v210
    %250 = vmatprep.subr.bf16.mxu0 0
    %251 = vmatpush1.bf16.msra.mxu0 0
    %252 = vmatprep.subr.bf16.mxu0 0
    %253 = vmatpush1.bf16.msra.mxu0 0
    %254 = vmatprep.subr.bf16.mxu0 0
    %255 = vmatpush1.bf16.msra.mxu0 0
    %256 = vmatprep.subr.bf16.mxu0 0
    %257 = vmatpush1.bf16.msra.mxu0 0
    %258 = vmatprep.subr.bf16.mxu0 0
    %259 = vmatpush1.bf16.msra.mxu0 0
    %260 = vmatprep.subr.bf16.mxu0 0
    %261 = vmatpush1.bf16.msra.mxu0 0
    %262 = vmatprep.subr.bf16.mxu0 0
    %263 = vmatpush1.bf16.msra.mxu0 0
    %264 = vmatprep.subr.bf16.mxu0 0
    %265 = vmatpush1.bf16.msra.mxu0 0
    %266 = vmatprep.subr.bf16.mxu0 0
    %267 = vmatpush1.bf16.msra.mxu0 0
    %268 = vmatprep.subr.bf16.mxu0 0
    %269 = vmatpush1.bf16.msra.mxu0 0
    %270 = vmatprep.subr.bf16.mxu0 0
    %271 = vmatpush1.bf16.msra.mxu0 0
    %272 = vmatprep.subr.bf16.mxu0 0
    %273 = vmatpush1.bf16.msra.mxu0 0
    %274 = vmatprep.mubr.bf16.mxu0 0
    %275 = vmatmul.mubr.bf16.gmra.mrb[0].mxu0 %v216
    %v276 = vpop.f32.mrb[0].mxu0
    %v277 = vadd.f32 0.0, %v276
    %v278 = vpop.f32.mrb[0].mxu0
    %v279 = vpop.f32.mrb[0].mxu0
    %v280 = vadd.f32 0.0, %v279
    %v281 = vpop.f32.mrb[0].mxu0
    %282 = vmatprep.mubr.bf16.mxu0 0
    %283 = vmatmul.mubr.bf16.gmra.mrb[0].mxu0 %v219
    %v284 = vpop.f32.mrb[0].mxu0
    %v285 = vadd.f32 0.0, %v284
    %v286 = vpop.f32.mrb[0].mxu0
    %v287 = vpop.f32.mrb[0].mxu0
    %v288 = vadd.f32 0.0, %v287
    %v289 = vpop.f32.mrb[0].mxu0
    %290 = vmatprep.mubr.bf16.mxu0 0
    %291 = vmatmul.mubr.bf16.gmra.mrb[0].mxu0 %v222
    %v292 = vpop.f32.mrb[0].mxu0
    %v293 = vadd.f32 0.0, %v292
    %v294 = vpop.f32.mrb[0].mxu0
    %v295 = vpop.f32.mrb[0].mxu0
    %v296 = vadd.f32 0.0, %v295
    %v297 = vpop.f32.mrb[0].mxu0
    %298 = vmatprep.mubr.bf16.mxu0 0
    %299 = vmatmul.mubr.bf16.gmra.mrb[0].mxu0 %v225
    %v300 = vpop.f32.mrb[0].mxu0
    %v301 = vadd.f32 0.0, %v300
    %v302 = vpop.f32.mrb[0].mxu0
    %v303 = vpop.f32.mrb[0].mxu0
    %v304 = vadd.f32 0.0, %v303
    %v305 = vpop.f32.mrb[0].mxu0
    %306 = vmatprep.mubr.bf16.mxu0 0
    %307 = vmatmul.mubr.bf16.gmra.mrb[0].mxu0 %v228
    %v308 = vpop.f32.mrb[0].mxu0
    %v309 = vadd.f32 0.0, %v308
    %v310 = vpop.f32.mrb[0].mxu0
    %v311 = vpop.f32.mrb[0].mxu0
    %v312 = vadd.f32 0.0, %v311
    %v313 = vpop.f32.mrb[0].mxu0
    %314 = vmatprep.mubr.bf16.mxu0 0
    %315 = vmatmul.mubr.bf16.gmra.mrb[0].mxu0 %v231
    %v316 = vpop.f32.mrb[0].mxu0
    %v317 = vadd.f32 0.0, %v316
    %v318 = vpop.f32.mrb[0].mxu0
    %v319 = vpop.f32.mrb[0].mxu0
    %v320 = vadd.f32 0.0, %v319
    %v321 = vpop.f32.mrb[0].mxu0
    %322 = vmatprep.mubr.bf16.mxu0 0
    %323 = vmatmul.mubr.bf16.gmra.mrb[0].mxu0 %v234
    %v324 = vpop.f32.mrb[0].mxu0
    %v325 = vadd.f32 0.0, %v324
    %v326 = vpop.f32.mrb[0].mxu0
    %v327 = vpop.f32.mrb[0].mxu0
    %v328 = vadd.f32 0.0, %v327
    %v329 = vpop.f32.mrb[0].mxu0
    %330 = vmatprep.mubr.bf16.mxu0 0
    %331 = vmatmul.mubr.bf16.gmra.mrb[0].mxu0 %v237
    %v332 = vpop.f32.mrb[0].mxu0
    %v333 = vadd.f32 0.0, %v332
    %v334 = vpop.f32.mrb[0].mxu0
    %v335 = vpop.f32.mrb[0].mxu0
    %v336 = vadd.f32 0.0, %v335
    %v337 = vpop.f32.mrb[0].mxu0
    %338 = vmatprep.mubr.bf16.mxu0 0
    %339 = vmatmul.mubr.bf16.gmra.mrb[0].mxu0 %v240
    %v340 = vpop.f32.mrb[0].mxu0
    %v341 = vadd.f32 0.0, %v340
    %v342 = vpop.f32.mrb[0].mxu0
    %v343 = vpop.f32.mrb[0].mxu0
    %v344 = vpop.f32.mrb[0].mxu0
    %345 = vdwg.mxu0
    %v346 = vld [vmem:[%s4] sm:$0x1]
    %v348 = vlaneseq
    %v349 = vshrl.u32 %v348, 7
    %v350 = vsub.s32 0, %v349
    %v351 = vrot.slane %v346, %v350
    %v353 = vadd.f32 %v277, %v351
    %v354 = vmax.f32 %v353, 0.0
    %355 = vst [vmem:[%s6] sm:$0xff] %v354
    %v356 = vld [vmem:[%s5] sm:$0x1]
    %v358 = vlaneseq
    %v359 = vshrl.u32 %v358, 7
    %v360 = vsub.s32 0, %v359
    %v361 = vrot.slane %v356, %v360
    %v363 = vadd.f32 %v277, %v361
    %v364 = vadd.f32 %v280, %v361
    %v365 = vadd.f32 %v285, %v361
    %v366 = vadd.f32 %v288, %v361
    %v367 = vadd.f32 %v293, %v361
    %v368 = vadd.f32 %v296, %v361
    %v369 = vadd.f32 %v301, %v361
    %v370 = vadd.f32 %v304, %v361
    %v371 = vadd.f32 %v309, %v361
    %v372 = vadd.f32 %v312, %v361
    %v373 = vadd.f32 %v317, %v361
    %v374 = vadd.f32 %v320, %v361
    %v375 = vadd.f32 %v325, %v361
    %v376 = vadd.f32 %v328, %v361
    %v377 = vadd.f32 %v333, %v361
    %v378 = vadd.f32 %v336, %v361
    %v379 = vadd.f32 %v341, %v361
    %v381 = vrot.slane %v363, 2
    %383 = vmatprep.subr.mxu0 0.0
    %384 = vmatpush1.xpose.msra.mxu0 %v364
    %385 = vmatprep.subr.mxu0 0.0
    %386 = vmatpush1.xpose.msra.mxu0 %v365
    %387 = vmatprep.subr.mxu0 0.0
    %388 = vmatpush1.xpose.msra.mxu0 %v366
    %389 = vmatprep.subr.mxu0 0.0
    %390 = vmatpush1.xpose.msra.mxu0 %v367
    %391 = vmatprep.subr.mxu0 0.0
    %392 = vmatpush1.xpose.msra.mxu0 %v368
    %393 = vmatprep.subr.mxu0 0.0
    %394 = vmatpush1.xpose.msra.mxu0 %v369
    %395 = vmatprep.subr.mxu0 0.0
    %396 = vmatpush1.xpose.msra.mxu0 %v370
    %397 = vmatprep.subr.mxu0 0.0
    %398 = vmatpush1.xpose.msra.mxu0 %v371
    %399 = vmatprep.subr.mxu0 0.0
    %400 = vmatpush1.xpose.msra.mxu0 %v372
    %401 = vmatprep.subr.mxu0 0.0
    %402 = vmatpush1.xpose.msra.mxu0 %v373
    %403 = vmatprep.subr.mxu0 0.0
    %404 = vmatpush1.xpose.msra.mxu0 %v374
    %405 = vmatprep.subr.mxu0 0.0
    %406 = vmatpush1.xpose.msra.mxu0 %v375
    %407 = vmatprep.subr.mxu0 0.0
    %408 = vmatpush1.xpose.msra.mxu0 %v376
    %409 = vmatprep.subr.mxu0 0.0
    %410 = vmatpush1.xpose.msra.mxu0 %v377
    %411 = vmatprep.subr.mxu0 0.0
    %412 = vmatpush1.xpose.msra.mxu0 %v378
    %413 = vmatprep.subr.mxu0 0.0
    %414 = vmatpush1.xpose.msra.mxu0 %v379
    %415 = vmatprep.subr.mxu0 0.0
    %416 = vmatpush1.xpose.msra.mxu0 0.0
    %417 = vmatprep.subr.mxu0 0.0
    %418 = vmatpush1.xpose.msra.mxu0 0.0
    %419 = vmatprep.subr.mxu0 0.0
    %420 = vmatpush1.xpose.msra.mxu0 0.0
    %421 = vmatprep.subr.mxu0 0.0
    %422 = vmatpush1.xpose.msra.mxu0 0.0
    %423 = vmatprep.subr.mxu0 0.0
    %424 = vmatpush1.xpose.msra.mxu0 0.0
    %425 = vmatprep.subr.mxu0 0.0
    %426 = vmatpush1.xpose.msra.mxu0 0.0
    %427 = vmatprep.subr.mxu0 0.0
    %428 = vmatpush1.xpose.msra.mxu0 0.0
    %429 = vmatprep.subr.mxu0 0.0
    %430 = vmatpush1.xpose.msra.mxu0 0.0
    %431 = vmatprep.subr.mxu0 0.0
    %432 = vmatpush1.xpose.msra.mxu0 0.0
    %433 = vmatprep.subr.mxu0 0.0
    %434 = vmatpush1.xpose.msra.mxu0 0.0
    %435 = vmatprep.subr.mxu0 0.0
    %436 = vmatpush1.xpose.msra.mxu0 0.0
    %437 = vmatprep.subr.mxu0 0.0
    %438 = vmatpush1.xpose.msra.mxu0 0.0
    %439 = vmatprep.subr.mxu0 0.0
    %440 = vmatpush1.xpose.msra.mxu0 0.0
    %441 = vmatprep.subr.mxu0 0.0
    %442 = vmatpush1.xpose.msra.mxu0 0.0
    %443 = vmatprep.subr.mxu0 0.0
    %444 = vmatpush1.xpose.msra.mxu0 0.0
    %445 = vmatprep.subr.mxu0 0.0
    %446 = vmatpush1.xpose.msra.mxu0 0.0
    %447 = vmatprep.mubr.f32.mxu0 0.0
    %448 = vmatmul.mubr.f32.gmra.mrb[0].mxu0 %v381
    %v449 = vpop.f32.mrb[0].mxu0
    %v450 = vadd.f32 0.0, %v449
    %v451 = vpop.f32.mrb[0].mxu0
    %452 = vdwg.mxu0
    %v453 = vmul.f32 %v364, %v364
    %v454 = vmul.f32 %v365, %v365
    %v455 = vmul.f32 %v366, %v366
    %v456 = vmul.f32 %v367, %v367
    %v457 = vmul.f32 %v368, %v368
    %v458 = vmul.f32 %v369, %v369
    %v459 = vmul.f32 %v370, %v370
    %v460 = vmul.f32 %v371, %v371
    %v461 = vmul.f32 %v372, %v372
    %v462 = vmul.f32 %v373, %v373
    %v463 = vmul.f32 %v374, %v374
    %v464 = vmul.f32 %v375, %v375
    %v465 = vmul.f32 %v376, %v376
    %v466 = vmul.f32 %v377, %v377
    %v467 = vmul.f32 %v378, %v378
    %v468 = vmul.f32 %v379, %v379
    %469 = vmatprep.subr.mxu0 0.0
    %470 = vmatpush1.xpose.msra.mxu0 %v453
    %471 = vmatprep.subr.mxu0 0.0
    %472 = vmatpush1.xpose.msra.mxu0 %v454
    %473 = vmatprep.subr.mxu0 0.0
    %474 = vmatpush1.xpose.msra.mxu0 %v455
    %475 = vmatprep.subr.mxu0 0.0
    %476 = vmatpush1.xpose.msra.mxu0 %v456
    %477 = vmatprep.subr.mxu0 0.0
    %478 = vmatpush1.xpose.msra.mxu0 %v457
    %479 = vmatprep.subr.mxu0 0.0
    %480 = vmatpush1.xpose.msra.mxu0 %v458
    %481 = vmatprep.subr.mxu0 0.0
    %482 = vmatpush1.xpose.msra.mxu0 %v459
    %483 = vmatprep.subr.mxu0 0.0
    %484 = vmatpush1.xpose.msra.mxu0 %v460
    %485 = vmatprep.subr.mxu0 0.0
    %486 = vmatpush1.xpose.msra.mxu0 %v461
    %487 = vmatprep.subr.mxu0 0.0
    %488 = vmatpush1.xpose.msra.mxu0 %v462
    %489 = vmatprep.subr.mxu0 0.0
    %490 = vmatpush1.xpose.msra.mxu0 %v463
    %491 = vmatprep.subr.mxu0 0.0
    %492 = vmatpush1.xpose.msra.mxu0 %v464
    %493 = vmatprep.subr.mxu0 0.0
    %494 = vmatpush1.xpose.msra.mxu0 %v465
    %495 = vmatprep.subr.mxu0 0.0
    %496 = vmatpush1.xpose.msra.mxu0 %v466
    %497 = vmatprep.subr.mxu0 0.0
    %498 = vmatpush1.xpose.msra.mxu0 %v467
    %499 = vmatprep.subr.mxu0 0.0
    %500 = vmatpush1.xpose.msra.mxu0 %v468
    %501 = vmatprep.subr.mxu0 0.0
    %502 = vmatpush1.xpose.msra.mxu0 0.0
    %503 = vmatprep.subr.mxu0 0.0
    %504 = vmatpush1.xpose.msra.mxu0 0.0
    %505 = vmatprep.subr.mxu0 0.0
    %506 = vmatpush1.xpose.msra.mxu0 0.0
    %507 = vmatprep.subr.mxu0 0.0
    %508 = vmatpush1.xpose.msra.mxu0 0.0
    %509 = vmatprep.subr.mxu0 0.0
    %510 = vmatpush1.xpose.msra.mxu0 0.0
    %511 = vmatprep.subr.mxu0 0.0
    %512 = vmatpush1.xpose.msra.mxu0 0.0
    %513 = vmatprep.subr.mxu0 0.0
    %514 = vmatpush1.xpose.msra.mxu0 0.0
    %515 = vmatprep.subr.mxu0 0.0
    %516 = vmatpush1.xpose.msra.mxu0 0.0
    %517 = vmatprep.subr.mxu0 0.0
    %518 = vmatpush1.xpose.msra.mxu0 0.0
    %519 = vmatprep.subr.mxu0 0.0
    %520 = vmatpush1.xpose.msra.mxu0 0.0
    %521 = vmatprep.subr.mxu0 0.0
    %522 = vmatpush1.xpose.msra.mxu0 0.0
    %523 = vmatprep.subr.mxu0 0.0
    %524 = vmatpush1.xpose.msra.mxu0 0.0
    %525 = vmatprep.subr.mxu0 0.0
    %526 = vmatpush1.xpose.msra.mxu0 0.0
    %527 = vmatprep.subr.mxu0 0.0
    %528 = vmatpush1.xpose.msra.mxu0 0.0
    %529 = vmatprep.subr.mxu0 0.0
    %530 = vmatpush1.xpose.msra.mxu0 0.0
    %531 = vmatprep.subr.mxu0 0.0
    %532 = vmatpush1.xpose.msra.mxu0 0.0
    %533 = vmatprep.mubr.f32.mxu0 0.0
    %534 = vmatmul.mubr.f32.gmra.mrb[0].mxu0 1.0
    %v535 = vpop.f32.mrb[0].mxu0
    %v536 = vadd.f32 0.0, %v535
    %v537 = vpop.f32.mrb[0].mxu0
    %538 = vdwg.mxu0
    %v539 = vmul.f32 %v363, %v363
    %vm540 = vcmask 1042434
    %v541 = vsel %vm540, %v539, 0.0
    %542 = vadd.xlane.f32.xlu0 %v541
    %v543 = vpop.xlane.xlu0 %542
    %v544 = vrsqrt.pop %v543
    %v545 = vmin.f32 %v544, 1e+08
    %v546 = vrsqrt.pop %v536
    %v547 = vmin.f32 %v546, 1e+08
    %v549 = vrot.slane %v547, 6
    %v551 = vmul.f32 %v545, %v549
    %v553 = vrot.slane %v551, 2
    %v555 = vmul.f32 %v450, %v553
    %v556 = vlaneseq
    %v557 = vand.u32 %v556, 127
    %vm558 = vcmp.lt.s32.totalorder %v557, 5
    %v559 = vsel %vm558, %v555, -1e+30
    %vm560 = vcmask 1040384
    %v561 = vsel %vm560, %v559, -inf
    %562 = vmax.xlane.f32.xlu0 %v561
    %v563 = vpop.xlane.xlu0 %562
    %v564 = vsub.f32 %v559, %v563
    %v565 = vmul.f32 %v564, 1.442695
    %v566 = vpow.pop %v565
    %v567 = vsel %vm560, %v566, 0.0
    %568 = vadd.xlane.f32.xlu0 %v567
    %v569 = vpop.xlane.xlu0 %568
    %v570 = vrcp.pop %v569
    %v571 = vmul.f32 %v566, %v570
    %v572 = vlaneseq
    %v573 = vshrl.u32 %v572, 7
    %v574 = vsub.s32 0, %v573
    %v575 = vrot.slane %v571, %v574
    %576 = vst [vmem:[%s7] sm:$0xff] %v575
    %vm577 = vcmp.eq.f32.partialorder %v559, %v563
    %v578 = vsel %vm577, %v557, 128
    %v579 = vsel %vm560, %v578, 2147483647
    %v580 = vand.u32 %v579, 65535
    %v581 = vshra.s32 %v579, 16
    %v582 = vcvt.s32.f32 %v580
    %v583 = vcvt.s32.f32 %v581
    %584 = vmin.xlane.f32.xlu0 %v583
    %v585 = vpop.xlane.xlu0 %584
    %vm586 = vcmp.eq.f32.partialorder %v583, %v585
    %v587 = vsel %vm586, %v582, inf
    %588 = vmin.xlane.f32.xlu0 %v587
    %v589 = vpop.xlane.xlu0 %588
    %v590 = vcvt.f32.s32 %v589
    %v591 = vcvt.f32.s32 %v585
    %v592 = vshll.u32 %v591, 16
    %v593 = vadd.s32 %v592, %v590
    %v594 = vrot.slane %v593, 4
    %vm595 = vcmp.lt.s32.totalorder %v593, %v594
    %v596 = vsel %vm595, %v593, %v594
    %v597 = vrot.slane %v596, 2
    %vm598 = vcmp.lt.s32.totalorder %v596, %v597
    %v599 = vsel %vm598, %v596, %v597
    %v600 = vrot.slane %v599, 1
    %vm601 = vcmp.lt.s32.totalorder %v599, %v600
    %v602 = vsel %vm601, %v599, %v600
    %s603 = vtos %v602
    %s604 = scalar_lea.smem [#allocation3], 0
    %605 = sst [smem:[%s604]] %s603
    %vm606 = vcmp.eq.s32.totalorder %v557, %v593
    %v607 = vsel %vm606, -1e+30, %v559
    %v608 = vsel %vm560, %v607, -inf
    %609 = vmax.xlane.f32.xlu0 %v608
    %v610 = vpop.xlane.xlu0 %609
    %vm611 = vcmp.eq.f32.partialorder %v607, %v610
    %v612 = vsel %vm611, %v557, 128
    %v613 = vsel %vm560, %v612, 2147483647
    %v614 = vand.u32 %v613, 65535
    %v615 = vshra.s32 %v613, 16
    %v616 = vcvt.s32.f32 %v614
    %v617 = vcvt.s32.f32 %v615
    %618 = vmin.xlane.f32.xlu0 %v617
    %v619 = vpop.xlane.xlu0 %618
    %vm620 = vcmp.eq.f32.partialorder %v617, %v619
    %v621 = vsel %vm620, %v616, inf
    %622 = vmin.xlane.f32.xlu0 %v621
    %v623 = vpop.xlane.xlu0 %622
    %v624 = vcvt.f32.s32 %v623
    %v625 = vcvt.f32.s32 %v619
    %v626 = vshll.u32 %v625, 16
    %v627 = vadd.s32 %v626, %v624
    %v628 = vrot.slane %v627, 4
    %vm629 = vcmp.lt.s32.totalorder %v627, %v628
    %v630 = vsel %vm629, %v627, %v628
    %v631 = vrot.slane %v630, 2
    %vm632 = vcmp.lt.s32.totalorder %v630, %v631
    %v633 = vsel %vm632, %v630, %v631
    %v634 = vrot.slane %v633, 1
    %vm635 = vcmp.lt.s32.totalorder %v633, %v634
    %v636 = vsel %vm635, %v633, %v634
    %s637 = vtos %v636
    %s638 = scalar_lea.smem [#allocation3], 1
    %639 = sst [smem:[%s638]] %s637
    %vm640 = vcmp.eq.s32.totalorder %v557, %v627
    %v641 = vsel %vm640, -1e+30, %v607
    %v642 = vsel %vm560, %v641, -inf
    %643 = vmax.xlane.f32.xlu0 %v642
    %v644 = vpop.xlane.xlu0 %643
    %vm645 = vcmp.eq.f32.partialorder %v641, %v644
    %v646 = vsel %vm645, %v557, 128
    %v647 = vsel %vm560, %v646, 2147483647
    %v648 = vand.u32 %v647, 65535
    %v649 = vshra.s32 %v647, 16
    %v650 = vcvt.s32.f32 %v648
    %v651 = vcvt.s32.f32 %v649
    %652 = vmin.xlane.f32.xlu0 %v651
    %v653 = vpop.xlane.xlu0 %652
    %vm654 = vcmp.eq.f32.partialorder %v651, %v653
    %v655 = vsel %vm654, %v650, inf
    %656 = vmin.xlane.f32.xlu0 %v655
    %v657 = vpop.xlane.xlu0 %656
    %v658 = vcvt.f32.s32 %v657
    %v659 = vcvt.f32.s32 %v653
    %v660 = vshll.u32 %v659, 16
    %v661 = vadd.s32 %v660, %v658
    %v662 = vrot.slane %v661, 4
    %vm663 = vcmp.lt.s32.totalorder %v661, %v662
    %v664 = vsel %vm663, %v661, %v662
    %v665 = vrot.slane %v664, 2
    %vm666 = vcmp.lt.s32.totalorder %v664, %v665
    %v667 = vsel %vm666, %v664, %v665
    %v668 = vrot.slane %v667, 1
    %vm669 = vcmp.lt.s32.totalorder %v667, %v668
    %v670 = vsel %vm669, %v667, %v668
    %s671 = vtos %v670
    %s672 = scalar_lea.smem [#allocation3], 2
    %673 = sst [smem:[%s672]] %s671
    // Predicated region
    $region26: #{fwd.1} parent=1 // pred_check
      _
    $region27: #{fwd.1} parent=1 // pred_check_branch
      %675 = sbr.rel (0) target = $region29
    $region28: #{fwd.1} parent=1 // pred_region
      _
    $region29: #{fwd.1} parent=1 // pred_fallthru
      _
    // Predicated region
    $region30: #{fwd.1} parent=1 // pred_check
      _
    $region31: #{fwd.1} parent=1 // pred_check_branch
      %677 = sbr.rel (0) target = $region33
    $region32: #{fwd.1} parent=1 // pred_region
      _
    $region33: #{fwd.1} parent=1 // pred_fallthru
      _
    // Predicated region
    $region34: #{fwd.1} parent=1 // pred_check
      _
    $region35: #{fwd.1} parent=1 // pred_check_branch
      %679 = sbr.rel (0) target = $region37
    $region36: #{fwd.1} parent=1 // pred_region
      %s681 = ssub.s32 16, 16
      %682 = vsyncadd [#allocation4], %s681
      %685 = dma.smem_to_hbm [#allocation3], 16, %s8, [#allocation4]
    $region37: #{fwd.1} parent=1 // pred_fallthru
      _
    // Predicated region
    $region38: #{fwd.1} parent=1 // pred_check
      _
    $region39: #{fwd.1} parent=1 // pred_check_branch
      %687 = sbr.rel (0) target = $region41
    $region40: #{fwd.1} parent=1 // pred_region
      _
    $region41: #{fwd.1} parent=1 // pred_fallthru
      _
    // Predicated region
    $region42: #{fwd.1} parent=1 // pred_check
      _
    $region43: #{fwd.1} parent=1 // pred_check_branch
      %689 = sbr.rel (0) target = $region45
    $region44: #{fwd.1} parent=1 // pred_region
      _
    $region45: #{fwd.1} parent=1 // pred_fallthru
      _
    // Predicated region
    $region46: #{fwd.1} parent=1 // pred_check
      _
    $region47: #{fwd.1} parent=1 // pred_check_branch
      %691 = sbr.rel (0) target = $region49
    $region48: #{fwd.1} parent=1 // pred_region
      %692 = dma.done [#allocation4], 16
    $region49: #{fwd.1} parent=1 // pred_fallthru
      _
    %693 = sfence
    %694 = vsyncpa [#allocation4], 1

</llo_original>
